<compile_context>
chip_gen: v6e
topology: v6e:2x2x1
jax: 0.10.0
libtpu: 0.0.40
codegen_flags: <defaults>
</compile_context>

<pallas_src>
import functools

import jax
import jax.numpy as jnp
from jax.experimental import pallas as pl
from jax.experimental.pallas import tpu as pltpu

_LANES = 128


def _round_up(x, m):
    return ((x + m - 1) // m) * m


def _pick_tile(n, tile_n=128):
    """Destination-row tile: 32-aligned (int8 adj sublanes), divides n, and
    yields >= 2 grid steps when possible so both v7x TensorCores get work."""
    if n <= tile_n:
        half = n // 2
        if n % 2 == 0 and half % 32 == 0:
            return half
        return n
    for t in range(tile_n, 31, -32):
        if n % t == 0:
            return t
    return n


def _const_spec(shape):
    """BlockSpec for a grid-invariant input (constant index_map).
    Single-buffered via pl.Buffered(1) when this jax build supports it
    (double-buffering a constant block is pure VMEM waste)."""
    imap = lambda i: (0,) * len(shape)
    try:
        return pl.BlockSpec(shape, imap, pipeline_mode=pl.Buffered(1))
    except Exception:  # pipeline_mode / Buffered unsupported -> default buffering
        return pl.BlockSpec(shape, imap)


# -------------------- pass 1: projection + attention terms ----------------- #
def _project_kernel(x_ref, w_ref, a_ref, h_ref, coef_ref):
    """h = x @ W (bf16 MXU, f32 acc), coef = h @ A (per-head src/dst terms)."""
    h = jnp.dot(x_ref[...], w_ref[...], preferred_element_type=jnp.float32)
    h_bf = h.astype(jnp.bfloat16)
    h_ref[...] = h_bf
    coef_ref[...] = jnp.dot(h_bf, a_ref[...],
                            preferred_element_type=jnp.float32)


# -------------- pass 2: masked softmax + aggregation + epilogue ------------ #
def _gat_agg_kernel(h_ref, coef_src_ref, coef_dst_ref, adj_ref, scale_ref,
                    shift_ref, o_ref, *, heads, out_ch, concat, apply_relu,
                    neg_slope=0.2):
    f32, bf16 = jnp.float32, jnp.bfloat16
    tile = o_ref.shape[0]

    edge = adj_ref[...].astype(f32) > 0.0              # [T, N] edge mask
    coef_src_t = jnp.transpose(coef_src_ref[...])      # [Cp, N]; one XLU transpose
    coef_dst = coef_dst_ref[...]                        # [T, Cp]
    scale = scale_ref[...]                              # [1, pad_out]
    shift = shift_ref[...]

    mean_acc = None
    for hd in range(heads):
        a_s = coef_src_t[hd:hd + 1, :]                  # [1, N] source term
        a_d = coef_dst[:, heads + hd:heads + hd + 1]    # [T, 1] dest term
        # e[i, j] = LeakyReLU(a_dst[i] + a_src[j]), masked to existing edges.
        e = a_d + a_s                                   # [T, N] f32
        e = jnp.where(e > 0, e, neg_slope * e)
        e = jnp.where(edge, e, -1e30)
        m = jnp.max(e, axis=-1, keepdims=True)          # f32 row max
        p = jnp.exp((e - m).astype(bf16))               # bf16 exp on the EUP
        denom = jnp.maximum(
            jnp.sum(p, axis=-1, keepdims=True, dtype=f32), 1e-20)
        hh = h_ref[:, hd * out_ch:(hd + 1) * out_ch]    # [N, F] bf16 source feats
        agg = jnp.dot(p, hh, preferred_element_type=f32)        # [T, F] MXU
        out_h = agg * pl.reciprocal(denom, approx=True)          # EUP recip

        if concat:
            lo, hi = hd * out_ch, (hd + 1) * out_ch
            y = out_h * scale[:, lo:hi] + shift[:, lo:hi]
            if apply_relu:
                y = jnp.maximum(y, 0.0)
            o_ref[:, lo:hi] = y.astype(o_ref.dtype)
        else:
            mean_acc = out_h if mean_acc is None else mean_acc + out_h

    used = heads * out_ch if concat else out_ch
    if not concat:
        y = mean_acc * (1.0 / float(heads)) * scale[:, :out_ch] + shift[:, :out_ch]
        if apply_relu:
            y = jnp.maximum(y, 0.0)
        o_ref[:, :out_ch] = y.astype(o_ref.dtype)

    pad = o_ref.shape[1] - used
    if pad:  # keep the lane-padded output slab well-defined (zeros)
        o_ref[:, used:] = jnp.zeros((tile, pad), o_ref.dtype)


# ------------------------------- layer wrapper ------------------------------ #
def gat_conv(x, adj_i8, w, a_mat, scale, shift, *, heads, out_ch, concat,
             apply_relu, out_dtype=jnp.float32, tile_n=128):
    """One GATConv layer (+ fused bias/BN/ReLU affine epilogue), two pallas_calls.

    Returns (lane-padded output [N, pad_out], out_dim)."""
    n, fin = x.shape
    fin_logical = w.shape[0]            # x may be lane-padded wider than this
    hf = heads * out_ch
    out_dim = hf if concat else out_ch
    hf_pad = _round_up(hf, _LANES)
    c_pad = _round_up(2 * heads, _LANES)
    pad_out = _round_up(out_dim, _LANES)

    tile = _pick_tile(n, tile_n)
    assert n % tile == 0, (n, tile)
    grid = (n // tile,)

    x_bf = x.astype(jnp.bfloat16)
    # Zero-pad W rows to the (possibly lane-padded) input width and W/A columns
    # to lane-dense widths so every matmul output block is already lane-dense.
    w_p = jnp.zeros((fin, hf_pad), jnp.float32).at[:fin_logical, :hf].set(w)
    a_p = jnp.zeros((hf_pad, c_pad), jnp.float32).at[:hf, :2 * heads].set(a_mat)
    w_bf = w_p.astype(jnp.bfloat16)
    a_bf = a_p.astype(jnp.bfloat16)
    scale_p = jnp.zeros((1, pad_out), jnp.float32).at[0, :out_dim].set(scale)
    shift_p = jnp.zeros((1, pad_out), jnp.float32).at[0, :out_dim].set(shift)

    # ---- pass 1: h and coef computed once over all nodes ----
    h_bf, coef = pl.pallas_call(
        _project_kernel,
        out_shape=(jax.ShapeDtypeStruct((n, hf_pad), jnp.bfloat16),
                   jax.ShapeDtypeStruct((n, c_pad), jnp.float32)),
        grid_spec=pltpu.PrefetchScalarGridSpec(
            num_scalar_prefetch=0,
            grid=grid,
            in_specs=[
                pl.BlockSpec((tile, fin), lambda i: (i, 0)),   # x row tile
                _const_spec((fin, hf_pad)),                    # W (padded)
                _const_spec((hf_pad, c_pad)),                  # A (padded)
            ],
            out_specs=[
                pl.BlockSpec((tile, hf_pad), lambda i: (i, 0)),
                pl.BlockSpec((tile, c_pad), lambda i: (i, 0)),
            ]),
        compiler_params=pltpu.CompilerParams(
            dimension_semantics=("parallel",)),
    )(x_bf, w_bf, a_bf)

    # ---- pass 2: per-dst-tile masked softmax, aggregation, fused epilogue ----
    kernel = functools.partial(_gat_agg_kernel, heads=heads, out_ch=out_ch,
                               concat=concat, apply_relu=apply_relu)
    out_padded = pl.pallas_call(
        kernel,
        out_shape=jax.ShapeDtypeStruct((n, pad_out), out_dtype),
        grid_spec=pltpu.PrefetchScalarGridSpec(
            num_scalar_prefetch=0,
            grid=grid,
            in_specs=[
                _const_spec((n, hf_pad)),                       # h (all sources)
                _const_spec((n, c_pad)),                        # coef (all sources)
                pl.BlockSpec((tile, c_pad), lambda i: (i, 0)),  # coef (dst tile view)
                # TODO(synk): bump adjacency to pipeline_mode=pl.Buffered(3) if
                # its DMA becomes exposed at large N.
                pl.BlockSpec((tile, n), lambda i: (i, 0)),      # adjacency int8
                _const_spec((1, pad_out)),                      # affine scale
                _const_spec((1, pad_out)),                      # affine shift
            ],
            out_specs=pl.BlockSpec((tile, pad_out), lambda i: (i, 0))),
        compiler_params=pltpu.CompilerParams(
            dimension_semantics=("parallel",),
            # v7x has 64 MiB physical VMEM -> keep the scoped budget below it.
            vmem_limit_bytes=48 * 1024 * 1024),
    )(h_bf, coef, coef, adj_i8, scale_p, shift_p)
    return out_padded, out_dim


# --------------------------------- model ----------------------------------- #
def _build_att_matrix(att_src, att_dst):
    """[H, F] x2 -> block-diagonal [H*F, 2H]: coef = h @ A gives per-head source
    terms in columns [0, H) and dest terms in columns [H, 2H)."""
    h, f = att_src.shape
    a = jnp.zeros((h * f, 2 * h), jnp.float32)
    for hd in range(h):
        a = a.at[hd * f:(hd + 1) * f, hd].set(att_src[hd])
        a = a.at[hd * f:(hd + 1) * f, h + hd].set(att_dst[hd])
    return a


def init_gat_params(key, nfeat, nhid, nclass, nheads, output_heads):
    ks = jax.random.split(key, 8)
    scale1 = 1.0 / jnp.sqrt(nfeat)
    scale2 = 1.0 / jnp.sqrt(nhid * nheads)
    return {
        # layer 0: nfeat -> nhid, heads=nheads, concat
        "w0": jax.random.normal(ks[0], (nfeat, nheads * nhid), jnp.float32) * scale1,
        "asrc0": jax.random.normal(ks[1], (nheads, nhid), jnp.float32) * 0.1,
        "adst0": jax.random.normal(ks[2], (nheads, nhid), jnp.float32) * 0.1,
        "b0": jnp.zeros((nheads * nhid,), jnp.float32),
        # batchnorm over nhid*nheads (eval / running stats after reset)
        "bn_gamma": jnp.ones((nheads * nhid,), jnp.float32),
        "bn_beta": jnp.zeros((nheads * nhid,), jnp.float32),
        "bn_mean": jnp.zeros((nheads * nhid,), jnp.float32),
        "bn_var": jnp.ones((nheads * nhid,), jnp.float32),
        # layer 1: nhid*nheads -> nclass, heads=output_heads, concat=False
        "w1": jax.random.normal(ks[3], (nheads * nhid, output_heads * nclass),
                                jnp.float32) * scale2,
        "asrc1": jax.random.normal(ks[4], (output_heads, nclass), jnp.float32) * 0.1,
        "adst1": jax.random.normal(ks[5], (output_heads, nclass), jnp.float32) * 0.1,
        "b1": jnp.zeros((nclass,), jnp.float32),
    }


def gat_forward(params, x, adj_i8, *, nhid, nclass, nheads, output_heads,
                bn_eps=1e-5):
    # Layer 0: GATConv -> (bias + BN(eval) folded into a per-channel affine) -> ReLU.
    bn_scale = params["bn_gamma"] * jax.lax.rsqrt(params["bn_var"] + bn_eps)
    shift0 = (params["b0"] - params["bn_mean"]) * bn_scale + params["bn_beta"]
    a0 = _build_att_matrix(params["asrc0"], params["adst0"])
    h_pad, _ = gat_conv(x, adj_i8, params["w0"], a0, bn_scale, shift0,
                        heads=nheads, out_ch=nhid, concat=True,
                        apply_relu=True, out_dtype=jnp.bfloat16)
    # (dropout: identity in eval mode)
    # h_pad stays as the lane-padded bf16 slab; layer-1 weights are row-padded
    # with zeros inside gat_conv so the padded lanes never contribute.

    # Layer 1: GATConv, mean over heads; epilogue = identity scale + bias.
    a1 = _build_att_matrix(params["asrc1"], params["adst1"])
    out_pad, out_dim = gat_conv(h_pad, adj_i8, params["w1"], a1,
                                jnp.ones((nclass,), jnp.float32), params["b1"],
                                heads=output_heads, out_ch=nclass, concat=False,
                                apply_relu=False, out_dtype=jnp.float32)
    return out_pad[:, :out_dim]


def build_dense_adj(edge_index, num_nodes):
    # edge_index[0] = source, edge_index[1] = destination (PyG convention);
    # adjacency mask indexed [dst, src], with self-loops (GATConv default).
    src, dst = edge_index[0], edge_index[1]
    adj = jnp.zeros((num_nodes, num_nodes), jnp.float32)
    adj = adj.at[dst, src].set(1.0)
    adj = adj.at[jnp.arange(num_nodes), jnp.arange(num_nodes)].set(1.0)
    return adj.astype(jnp.int8)          # int8: kernel only needs adj != 0


if __name__ == "__main__":
    N, NFEAT, NHID, NCLASS, NHEADS, OUT_HEADS, E = 128, 32, 16, 8, 4, 1, 512

    key = jax.random.PRNGKey(0)
    kx, ke_src, ke_dst, kp = jax.random.split(key, 4)

    x = jax.random.normal(kx, (N, NFEAT), jnp.float32)
    edge_index = jnp.stack([
        jax.random.randint(ke_src, (E,), 0, N),
        jax.random.randint(ke_dst, (E,), 0, N),
    ], axis=0)
    adj = build_dense_adj(edge_index, N)

    params = init_gat_params(kp, NFEAT, NHID, NCLASS, NHEADS, OUT_HEADS)

    out = gat_forward(params, x, adj, nhid=NHID, nclass=NCLASS,
                      nheads=NHEADS, output_heads=OUT_HEADS)
    out = jax.block_until_ready(out)
    assert out.shape == (N, NCLASS), out.shape
    assert bool(jnp.all(jnp.isfinite(out)))
    print("KERNEL_OK")
</pallas_src>

<mosaic_0001>
module attributes {stable_mosaic.version = 11 : i64} {
  func.func @_project_kernel(%arg0: i32, %arg1: memref<64x32xbf16, #tpu.memory_space<vmem>>, %arg2: memref<32x128xbf16, #tpu.memory_space<vmem>>, %arg3: memref<128x128xbf16, #tpu.memory_space<vmem>>, %arg4: memref<64x128xbf16, #tpu.memory_space<vmem>>, %arg5: memref<64x128xf32, #tpu.memory_space<vmem>>) attributes {dimension_semantics = [#tpu.dimension_semantics<parallel>], iteration_bounds = array<i64: 2>, scalar_prefetch = 0 : i64, scratch_operands = 0 : i64, tpu.core_type = #tpu.core_type<tc>, window_params = [{transform_indices = @transform_0, window_bounds = array<i64: 64, 32>}, {pipeline_mode = #tpu.pipeline_mode<synchronous>, transform_indices = @transform_1, window_bounds = array<i64: 32, 128>}, {pipeline_mode = #tpu.pipeline_mode<synchronous>, transform_indices = @transform_2, window_bounds = array<i64: 128, 128>}, {transform_indices = @transform_3, window_bounds = array<i64: 64, 128>}, {transform_indices = @transform_4, window_bounds = array<i64: 64, 128>}]} {
    %c0 = arith.constant 0 : index
    %c0_0 = arith.constant 0 : index
    %0 = vector.load %arg1[%c0, %c0_0] : memref<64x32xbf16, #tpu.memory_space<vmem>>, vector<64x32xbf16>
    %c0_1 = arith.constant 0 : index
    %c0_2 = arith.constant 0 : index
    %1 = vector.load %arg2[%c0_1, %c0_2] : memref<32x128xbf16, #tpu.memory_space<vmem>>, vector<32x128xbf16>
    %cst = arith.constant dense<0.000000e+00> : vector<64x128xf32>
    %2 = tpu.matmul %0, %1, %cst {dimension_numbers = #tpu.dot_dimension_numbers<[1], [0], [0], [1], [0, 0, 1, 1], [], []>} : vector<64x32xbf16>, vector<32x128xbf16>, vector<64x128xf32> -> vector<64x128xf32>
    %3 = arith.truncf %2 : vector<64x128xf32> to vector<64x128xbf16>
    %c0_3 = arith.constant 0 : index
    %c0_4 = arith.constant 0 : index
    %4 = vector.load %arg4[%c0_3, %c0_4] : memref<64x128xbf16, #tpu.memory_space<vmem>>, vector<64x128xbf16>
    tpu.vector_store %arg4[%c0_3, %c0_4], %3 {strides = array<i32>} : memref<64x128xbf16, #tpu.memory_space<vmem>>, vector<64x128xbf16>,
    %c0_5 = arith.constant 0 : index
    %c0_6 = arith.constant 0 : index
    %5 = vector.load %arg3[%c0_5, %c0_6] : memref<128x128xbf16, #tpu.memory_space<vmem>>, vector<128x128xbf16>
    %cst_7 = arith.constant dense<0.000000e+00> : vector<64x128xf32>
    %6 = tpu.matmul %3, %5, %cst_7 {dimension_numbers = #tpu.dot_dimension_numbers<[1], [0], [0], [1], [0, 0, 1, 1], [], []>} : vector<64x128xbf16>, vector<128x128xbf16>, vector<64x128xf32> -> vector<64x128xf32>
    %c0_8 = arith.constant 0 : index
    %c0_9 = arith.constant 0 : index
    %7 = vector.load %arg5[%c0_8, %c0_9] : memref<64x128xf32, #tpu.memory_space<vmem>>, vector<64x128xf32>
    tpu.vector_store %arg5[%c0_8, %c0_9], %6 {strides = array<i32>} : memref<64x128xf32, #tpu.memory_space<vmem>>, vector<64x128xf32>,
    return
  }
  func.func @transform_0(%arg0: i32) -> (i32, i32) {
    %c0_i32 = arith.constant 0 : i32
    %c0_i32_0 = arith.constant 0 : i32
    return %arg0, %c0_i32 : i32, i32
  }
  func.func @transform_1(%arg0: i32) -> (i32, i32) {
    %c0_i32 = arith.constant 0 : i32
    %c0_i32_0 = arith.constant 0 : i32
    %c0_i32_1 = arith.constant 0 : i32
    return %c0_i32, %c0_i32_0 : i32, i32
  }
  func.func @transform_2(%arg0: i32) -> (i32, i32) {
    %c0_i32 = arith.constant 0 : i32
    %c0_i32_0 = arith.constant 0 : i32
    %c0_i32_1 = arith.constant 0 : i32
    return %c0_i32, %c0_i32_0 : i32, i32
  }
  func.func @transform_3(%arg0: i32) -> (i32, i32) {
    %c0_i32 = arith.constant 0 : i32
    %c0_i32_0 = arith.constant 0 : i32
    return %arg0, %c0_i32 : i32, i32
  }
  func.func @transform_4(%arg0: i32) -> (i32, i32) {
    %c0_i32 = arith.constant 0 : i32
    %c0_i32_0 = arith.constant 0 : i32
    return %arg0, %c0_i32 : i32, i32
  }
}

</mosaic_0001>

<llo_original>
// kernel: tpu_custom_call.1
$region0: #{tpu_custom_call.1}
  #allocation0 [shape = 'u32[]', space=smem, size = 0x4, offset = 0x4, fixed_abs, tag = 'smem constant byte address 0x4 - core index']
  #allocation1 [shape = 'u32[144,128]{1,0:T(1,128)}', space=vmem, size = 0x12000, scoped, tag = 'internal scratch']
  %s0 = inlined_call_operand.vmem [shape: bf16[128,32], index: 0, kind: input, shape index: {}]
  %s1 = inlined_call_operand.vmem [shape: bf16[32,128], index: 1, kind: input, shape index: {}]
  %s2 = inlined_call_operand.vmem [shape: bf16[128,128], index: 2, kind: input, shape index: {}]
  %s3 = inlined_call_operand.hbm [shape: bf16[128,128], index: 3, kind: output, shape index: {0}]
  %s4 = inlined_call_operand.hbm [shape: f32[128,128], index: 4, kind: output, shape index: {1}]
  %5 = xla_tuple %s3, %s4
  %s6 = sld [smem:[#allocation0]]
  $region53: #{tpu_custom_call.1} parent=0
    _
  %s8 = ssub.s32 1, %s6
  %s9 = scalar_select 0, %s8, %s6
  $region1: #{tpu_custom_call.1} parent=0
    #allocation2 [shape = 'u8[32768]{0}', space=vmem, size = 0x8000, scoped, tag = 'output window, operand 0']
    #allocation3 [shape = 's32[2]{0}', space=sflag, size = 0x8, scoped, tag = 'scoped memory for tpu_custom_call.1']
    #allocation4 [shape = 'u8[65536]{0}', space=vmem, size = 0x10000, scoped, tag = 'output window, operand 1']
    #allocation5 [shape = 's32[2]{0}', space=sflag, size = 0x8, scoped, tag = 'scoped memory for tpu_custom_call.1']
    %10 = vsyncpa [#allocation3], 0
    %s11 = scalar_lea.sflag [#allocation3], 1
    %12 = vsyncpa %s11, 0
    %13 = vsyncpa [#allocation5], 0
    %s14 = scalar_lea.sflag [#allocation5], 1
    %15 = vsyncpa %s14, 0
    loop: start=0, step=1, limit=4
    $region2: #{tpu_custom_call.1} parent=1 // loop_pre_header
      _
    $region3: #{tpu_custom_call.1} parent=1 // loop_header
      %s17 = sphi 0, %s21
      %p18 = scmp.ge.s32.totalorder %s17, 4
      %s27 = sphi 0, %s29
      %s30 = sphi 0, %s27
      %s31 = sphi 0, %s30
      %s47 = sphi 0, %s31
      %s51 = sphi 0, %s51
      %s53 = sphi 0, %s51
      %s54 = sphi 0, %s53
      %s68 = sphi 0, %s54
      %s72 = sphi 0, %s72
      %s74 = sphi 0, %s72
      %s75 = sphi 0, %s74
      %s89 = sphi 0, %s75
      %s95 = sphi 0, %s97
      %s98 = sphi 0, %s95
      %s99 = sphi 0, %s98
      %s115 = sphi 0, %s99
      %s121 = sphi 0, %s123
      %s124 = sphi 0, %s121
      %s125 = sphi 0, %s124
      %s141 = sphi 0, %s125
    $region4: #{tpu_custom_call.1} parent=1 // loop_header_branch
      %20 = sbr.rel (%p18) target = $region8
    $region5: #{tpu_custom_call.1} parent=1 // loop_body
      %s22 = ssub.s32 %s17, 1
      %s23 = ssub.s32 %s17, 2
      %s24 = sadd.s32 %s17, 1
      %s25 = ssub.s32 %s17, %s24
      %p26 = scmp.eq.s32.totalorder %s25, 0
      %s28 = sadd.s32 %s27, 1
      %s29 = scalar_select %p26, %s27, %s28
      %p32 = pneg %p26
      %p33 = scmp.eq.s32.totalorder %s17, 1
      %p34 = por %p32, %p33
      %p35 = scmp.ne.s32.totalorder %s27, %s30
      %p36 = scmp.eq.s32.totalorder %s17, 0
      %p37 = por %p35, %p36
      %p38 = scmp.ne.s32.totalorder %s27, %s30
      %p39 = scmp.eq.s32.totalorder %s22, 1
      %p40 = por %p38, %p39
      %p41 = scmp.ne.s32.totalorder %s30, %s31
      %p42 = scmp.eq.s32.totalorder %s22, 0
      %p43 = por %p41, %p42
      %p44 = scmp.ne.s32.totalorder %s30, %s31
      %p45 = scmp.eq.s32.totalorder %s23, 1
      %p46 = por %p44, %p45
      %p48 = scmp.ne.s32.totalorder %s31, %s47
      %p49 = scmp.eq.s32.totalorder %s23, 0
      %p50 = por %p48, %p49
      %s52 = sadd.s32 %s51, 1
      %p55 = scmp.eq.s32.totalorder %s17, 1
      %p56 = scmp.ne.s32.totalorder %s51, %s53
      %p57 = scmp.eq.s32.totalorder %s17, 0
      %p58 = por %p56, %p57
      %p59 = scmp.ne.s32.totalorder %s51, %s53
      %p60 = scmp.eq.s32.totalorder %s22, 1
      %p61 = por %p59, %p60
      %p62 = scmp.ne.s32.totalorder %s53, %s54
      %p63 = scmp.eq.s32.totalorder %s22, 0
      %p64 = por %p62, %p63
      %p65 = scmp.ne.s32.totalorder %s53, %s54
      %p66 = scmp.eq.s32.totalorder %s23, 1
      %p67 = por %p65, %p66
      %p69 = scmp.ne.s32.totalorder %s54, %s68
      %p70 = scmp.eq.s32.totalorder %s23, 0
      %p71 = por %p69, %p70
      %s73 = sadd.s32 %s72, 1
      %p76 = scmp.eq.s32.totalorder %s17, 1
      %p77 = scmp.ne.s32.totalorder %s72, %s74
      %p78 = scmp.eq.s32.totalorder %s17, 0
      %p79 = por %p77, %p78
      %p80 = scmp.ne.s32.totalorder %s72, %s74
      %p81 = scmp.eq.s32.totalorder %s22, 1
      %p82 = por %p80, %p81
      %p83 = scmp.ne.s32.totalorder %s74, %s75
      %p84 = scmp.eq.s32.totalorder %s22, 0
      %p85 = por %p83, %p84
      %p86 = scmp.ne.s32.totalorder %s74, %s75
      %p87 = scmp.eq.s32.totalorder %s23, 1
      %p88 = por %p86, %p87
      %p90 = scmp.ne.s32.totalorder %s75, %s89
      %p91 = scmp.eq.s32.totalorder %s23, 0
      %p92 = por %p90, %p91
      %s93 = ssub.s32 %s17, %s24
      %p94 = scmp.eq.s32.totalorder %s93, 0
      %s96 = sadd.s32 %s95, 1
      %s97 = scalar_select %p94, %s95, %s96
      %p100 = pneg %p94
      %p101 = scmp.eq.s32.totalorder %s17, 1
      %p102 = por %p100, %p101
      %p103 = scmp.ne.s32.totalorder %s95, %s98
      %p104 = scmp.eq.s32.totalorder %s17, 0
      %p105 = por %p103, %p104
      %p106 = scmp.ne.s32.totalorder %s95, %s98
      %p107 = scmp.eq.s32.totalorder %s22, 1
      %p108 = por %p106, %p107
      %p109 = scmp.ne.s32.totalorder %s98, %s99
      %p110 = scmp.eq.s32.totalorder %s22, 0
      %p111 = por %p109, %p110
      %p112 = scmp.ne.s32.totalorder %s98, %s99
      %p113 = scmp.eq.s32.totalorder %s23, 1
      %p114 = por %p112, %p113
      %p116 = scmp.ne.s32.totalorder %s99, %s115
      %p117 = scmp.eq.s32.totalorder %s23, 0
      %p118 = por %p116, %p117
      %s119 = ssub.s32 %s17, %s24
      %p120 = scmp.eq.s32.totalorder %s119, 0
      %s122 = sadd.s32 %s121, 1
      %s123 = scalar_select %p120, %s121, %s122
      %p126 = pneg %p120
      %p127 = scmp.eq.s32.totalorder %s17, 1
      %p128 = por %p126, %p127
      %p129 = scmp.ne.s32.totalorder %s121, %s124
      %p130 = scmp.eq.s32.totalorder %s17, 0
      %p131 = por %p129, %p130
      %p132 = scmp.ne.s32.totalorder %s121, %s124
      %p133 = scmp.eq.s32.totalorder %s22, 1
      %p134 = por %p132, %p133
      %p135 = scmp.ne.s32.totalorder %s124, %s125
      %p136 = scmp.eq.s32.totalorder %s22, 0
      %p137 = por %p135, %p136
      %p138 = scmp.ne.s32.totalorder %s124, %s125
      %p139 = scmp.eq.s32.totalorder %s23, 1
      %p140 = por %p138, %p139
      %p142 = scmp.ne.s32.totalorder %s125, %s141
      %p143 = scmp.eq.s32.totalorder %s23, 0
      %p144 = por %p142, %p143
      %p145 = scmp.le.s32.totalorder 1, %s17
      %p146 = scmp.lt.s32.totalorder %s17, 3
      %p147 = pnand %p145, %p146
      %p148 = pneg %p147
      // Predicated region
      $region9: #{tpu_custom_call.1} parent=5 // pred_check
        _
      $region10: #{tpu_custom_call.1} parent=5 // pred_check_branch
        %150 = sbr.rel (%p147) target = $region12
      $region11: #{tpu_custom_call.1} parent=5 // pred_region
        %s151 = ssub.s32 %s17, 1
        // Predicated region
        $region13: #{tpu_custom_call.1} parent=11 // pred_check
          %p152 = pneg %p64
        $region14: #{tpu_custom_call.1} parent=11 // pred_check_branch
          %154 = sbr.rel (%p152) target = $region16
        $region15: #{tpu_custom_call.1} parent=11 // pred_region
          _
        $region16: #{tpu_custom_call.1} parent=11 // pred_fallthru
          _
        // Predicated region
        $region17: #{tpu_custom_call.1} parent=11 // pred_check
          %p155 = pneg %p85
        $region18: #{tpu_custom_call.1} parent=11 // pred_check_branch
          %157 = sbr.rel (%p155) target = $region20
        $region19: #{tpu_custom_call.1} parent=11 // pred_region
          _
        $region20: #{tpu_custom_call.1} parent=11 // pred_fallthru
          _
      $region12: #{tpu_custom_call.1} parent=5 // pred_fallthru
        _
      %p158 = scmp.lt.s32.totalorder %s17, 2
      // Predicated region
      $region21: #{tpu_custom_call.1} parent=5 // pred_check
        %p159 = pneg %p158
      $region22: #{tpu_custom_call.1} parent=5 // pred_check_branch
        %161 = sbr.rel (%p159) target = $region24
      $region23: #{tpu_custom_call.1} parent=5 // pred_region
        // Predicated region
        $region25: #{tpu_custom_call.1} parent=23 // pred_check
          %p162 = pneg %p37
        $region26: #{tpu_custom_call.1} parent=23 // pred_check_branch
          %164 = sbr.rel (%p162) target = $region28
        $region27: #{tpu_custom_call.1} parent=23 // pred_region
          %s165 = smul.u32 8, %s17
          %p166 = scmp.lt.s32.totalorder %s165, 15
          %s167 = scalar_select %p166, %s165, 15
          %s168 = smul.addr %s167, 4
          %s169 = scalar_lea.vmem %s0, %s168
          %s170 = smul.u32 8, %s17
        $region28: #{tpu_custom_call.1} parent=23 // pred_fallthru
          _
      $region24: #{tpu_custom_call.1} parent=5 // pred_fallthru
        _
      %p171 = scmp.le.s32.totalorder 1, %s17
      %p172 = scmp.lt.s32.totalorder %s17, 3
      %p173 = pnand %p171, %p172
      %p174 = pneg %p173
      // Predicated region
      $region29: #{tpu_custom_call.1} parent=5 // pred_check
        _
      $region30: #{tpu_custom_call.1} parent=5 // pred_check_branch
        %176 = sbr.rel (%p173) target = $region32
      $region31: #{tpu_custom_call.1} parent=5 // pred_region
        %s177 = ssub.s32 %s17, 1
        %s178 = smul.u32 8, %s22
        %p179 = scmp.lt.s32.totalorder %s178, 15
        %s180 = scalar_select %p179, %s178, 15
        %s181 = smul.addr %s180, 4
        %s182 = scalar_lea.vmem %s0, %s181
        %p183 = pneg %p43
        %p184 = pneg %p40
        %p185 = pneg %p64
        %p186 = pneg %p61
        %p187 = pneg %p85
        %p188 = pneg %p82
        %p189 = pneg %p111
        %p190 = pneg %p108
        %s191 = sand.u32 %s98, 1
        %s192 = scalar_lea.sflag [#allocation3], %s191
        %s193 = sand.u32 %s98, 1
        %s194 = smul.addr %s193, 32
        %s195 = scalar_lea.vmem [#allocation2], %s194
        %p196 = pneg %p137
        %p197 = pneg %p134
        %s198 = sand.u32 %s124, 1
        %s199 = scalar_lea.sflag [#allocation5], %s198
        %s200 = sand.u32 %s124, 1
        %s201 = smul.addr %s200, 64
        %s202 = scalar_lea.vmem [#allocation4], %s201
        %s203 = smul.u32 8, %s22
        %p204 = scmp.lt.s32.totalorder %s203, 15
        %s205 = scalar_select %p204, %s203, 15
        %s206 = smul.addr %s205, 4
        %s207 = scalar_lea.vmem %s0, %s206
        %s208 = smul.u32 8, %s22
        %s209 = smul.u32 8, %s22
        %s210 = smul.u32 8, %s22
        %v212 = vld [vmem:[%s207] sm:$0xf]
        %v213 = vld [vmem:[%s207 + $0x4] sm:$0xf]
        %v214 = vld [vmem:[%s207 + $0x8] sm:$0xf]
        %v215 = vld [vmem:[%s207 + $0xc] sm:$0xf]
        %v216 = vld [vmem:[%s207 + $0x10] sm:$0xf]
        %v217 = vld [vmem:[%s207 + $0x14] sm:$0xf]
        %v218 = vld [vmem:[%s207 + $0x18] sm:$0xf]
        %v219 = vld [vmem:[%s207 + $0x1c] sm:$0xf]
        %v220 = vld [vmem:[%s1] sm:$0xf]
        %v221 = vld [vmem:[%s1 + $0x4] sm:$0xf]
        %v222 = vld [vmem:[%s1 + $0x8] sm:$0xf]
        %v223 = vld [vmem:[%s1 + $0xc] sm:$0xf]
        %v232 = vunpack.c.l.b16 %v212
        %v233 = vunpack.c.l.b16 %v213
        %v234 = vunpack.c.l.b16 %v214
        %v235 = vunpack.c.l.b16 %v215
        %v236 = vunpack.c.l.b16 %v216
        %v237 = vunpack.c.l.b16 %v217
        %v238 = vunpack.c.l.b16 %v218
        %v239 = vunpack.c.l.b16 %v219
        %v240 = vpack.c.b16 %v233, %v232
        %v241 = vpack.c.b16 %v235, %v234
        %v242 = vpack.c.b16 %v237, %v236
        %v243 = vpack.c.b16 %v239, %v238
        %v248 = vunpack.c.l.b16 %v220
        %v249 = vunpack.c.l.b16 %v221
        %v250 = vunpack.c.l.b16 %v222
        %v251 = vunpack.c.l.b16 %v223
        %v252 = vpack.c.b16 %v249, %v248
        %v253 = vpack.c.b16 %v251, %v250
        %vm256 = vcmask 261120
        %v258 = vsel %vm256, %v240, 0
        %v261 = vsel %vm256, %v241, 0
        %v264 = vsel %vm256, %v242, 0
        %v267 = vsel %vm256, %v243, 0
        %269 = vmatprep.subr.bf16.mxu0 0
        %270 = vmatpush1.bf16.msra.mxu0 0
        %271 = vmatprep.subr.bf16.mxu0 0
        %272 = vmatpush1.bf16.msra.mxu0 0
        %273 = vmatprep.subr.bf16.mxu0 0
        %274 = vmatpush1.bf16.msra.mxu0 0
        %275 = vmatprep.subr.bf16.mxu0 0
        %276 = vmatpush1.bf16.msra.mxu0 0
        %277 = vmatprep.subr.bf16.mxu0 0
        %278 = vmatpush1.bf16.msra.mxu0 0
        %279 = vmatprep.subr.bf16.mxu0 0
        %280 = vmatpush1.bf16.msra.mxu0 0
        %281 = vmatprep.subr.bf16.mxu0 0
        %282 = vmatpush1.bf16.msra.mxu0 %v253
        %283 = vmatprep.subr.bf16.mxu0 0
        %284 = vmatpush1.bf16.msra.mxu0 %v252
        %285 = vmatprep.subr.bf16.mxu0 0
        %286 = vmatpush2.bf16.msra.mxu0 0
        %287 = vmatprep.subr.bf16.mxu0 0
        %288 = vmatpush2.bf16.msra.mxu0 0
        %289 = vmatprep.subr.bf16.mxu0 0
        %290 = vmatpush2.bf16.msra.mxu0 0
        %291 = vmatprep.subr.bf16.mxu0 0
        %292 = vmatpush2.bf16.msra.mxu0 0
        %293 = vmatprep.subr.bf16.mxu0 0
        %294 = vmatpush2.bf16.msra.mxu0 0
        %295 = vmatprep.subr.bf16.mxu0 0
        %296 = vmatpush2.bf16.msra.mxu0 0
        %297 = vmatprep.subr.bf16.mxu0 0
        %298 = vmatpush2.bf16.msra.mxu0 0
        %299 = vmatprep.subr.bf16.mxu0 0
        %300 = vmatpush2.bf16.msra.mxu0 0
        %301 = vmatprep.mubr.bf16.mxu0 0
        %302 = vmatmul.mubr.bf16.gmra.mxu0 %v258
        %v303 = vpop.f32.mrf.mxu0
        %v304 = vadd.f32 0.0, %v303
        %v305 = vpop.f32.mrf.mxu0
        %v306 = vpop.f32.mrf.mxu0
        %v307 = vadd.f32 0.0, %v306
        %v308 = vpop.f32.mrf.mxu0
        %309 = vmatprep.mubr.bf16.mxu0 0
        %310 = vmatmul.mubr.bf16.gmra.mxu0 %v261
        %v311 = vpop.f32.mrf.mxu0
        %v312 = vadd.f32 0.0, %v311
        %v313 = vpop.f32.mrf.mxu0
        %v314 = vpop.f32.mrf.mxu0
        %v315 = vadd.f32 0.0, %v314
        %v316 = vpop.f32.mrf.mxu0
        %317 = vmatprep.mubr.bf16.mxu0 0
        %318 = vmatmul.mubr.bf16.gmra.mxu0 %v264
        %v319 = vpop.f32.mrf.mxu0
        %v320 = vadd.f32 0.0, %v319
        %v321 = vpop.f32.mrf.mxu0
        %v322 = vpop.f32.mrf.mxu0
        %v323 = vadd.f32 0.0, %v322
        %v324 = vpop.f32.mrf.mxu0
        %325 = vmatprep.mubr.bf16.mxu0 0
        %326 = vmatmul.mubr.bf16.gmra.mxu0 %v267
        %v327 = vpop.f32.mrf.mxu0
        %v328 = vadd.f32 0.0, %v327
        %v329 = vpop.f32.mrf.mxu0
        %v330 = vpop.f32.mrf.mxu0
        %v331 = vadd.f32 0.0, %v330
        %v332 = vpop.f32.mrf.mxu0
        %333 = vdwg.mxu0
        %v334 = vpack.c.bf16 %v307, %v304
        %v335 = vpack.c.bf16 %v315, %v312
        %v336 = vpack.c.bf16 %v323, %v320
        %v337 = vpack.c.bf16 %v331, %v328
        %v342 = vunpack.c.l.b16 %v334
        %v343 = vunpack.c.h.b16 %v334
        %v344 = vunpack.c.l.b16 %v335
        %v345 = vunpack.c.h.b16 %v335
        %v346 = vunpack.c.l.b16 %v336
        %v347 = vunpack.c.h.b16 %v336
        %v348 = vunpack.c.l.b16 %v337
        %v349 = vunpack.c.h.b16 %v337
        %v350 = vpack.c.b16 %v342, %v342
        %v351 = vpack.c.b16 %v343, %v343
        %v352 = vpack.c.b16 %v344, %v344
        %v353 = vpack.c.b16 %v345, %v345
        %v354 = vpack.c.b16 %v346, %v346
        %v355 = vpack.c.b16 %v347, %v347
        %v356 = vpack.c.b16 %v348, %v348
        %v357 = vpack.c.b16 %v349, %v349
        %366 = vst [vmem:[%s195] sm:$0xf] %v350
        %367 = vst [vmem:[%s195 + $0x4] sm:$0xf] %v351
        %368 = vst [vmem:[%s195 + $0x8] sm:$0xf] %v352
        %369 = vst [vmem:[%s195 + $0xc] sm:$0xf] %v353
        %370 = vst [vmem:[%s195 + $0x10] sm:$0xf] %v354
        %371 = vst [vmem:[%s195 + $0x14] sm:$0xf] %v355
        %372 = vst [vmem:[%s195 + $0x18] sm:$0xf] %v356
        %373 = vst [vmem:[%s195 + $0x1c] sm:$0xf] %v357
        %v374 = vld [vmem:[%s2] sm:$0xf]
        %v375 = vld [vmem:[%s2 + $0x4] sm:$0xf]
        %v376 = vld [vmem:[%s2 + $0x8] sm:$0xf]
        %v377 = vld [vmem:[%s2 + $0xc] sm:$0xf]
        %v378 = vld [vmem:[%s2 + $0x10] sm:$0xf]
        %v379 = vld [vmem:[%s2 + $0x14] sm:$0xf]
        %v380 = vld [vmem:[%s2 + $0x18] sm:$0xf]
        %v381 = vld [vmem:[%s2 + $0x1c] sm:$0xf]
        %v382 = vld [vmem:[%s2 + $0x20] sm:$0xf]
        %v383 = vld [vmem:[%s2 + $0x24] sm:$0xf]
        %v384 = vld [vmem:[%s2 + $0x28] sm:$0xf]
        %v385 = vld [vmem:[%s2 + $0x2c] sm:$0xf]
        %v386 = vld [vmem:[%s2 + $0x30] sm:$0xf]
        %v387 = vld [vmem:[%s2 + $0x34] sm:$0xf]
        %v388 = vld [vmem:[%s2 + $0x38] sm:$0xf]
        %v389 = vld [vmem:[%s2 + $0x3c] sm:$0xf]
        %v406 = vunpack.c.l.b16 %v374
        %v407 = vunpack.c.l.b16 %v375
        %v408 = vunpack.c.l.b16 %v376
        %v409 = vunpack.c.l.b16 %v377
        %v410 = vunpack.c.l.b16 %v378
        %v411 = vunpack.c.l.b16 %v379
        %v412 = vunpack.c.l.b16 %v380
        %v413 = vunpack.c.l.b16 %v381
        %v414 = vunpack.c.l.b16 %v382
        %v415 = vunpack.c.l.b16 %v383
        %v416 = vunpack.c.l.b16 %v384
        %v417 = vunpack.c.l.b16 %v385
        %v418 = vunpack.c.l.b16 %v386
        %v419 = vunpack.c.l.b16 %v387
        %v420 = vunpack.c.l.b16 %v388
        %v421 = vunpack.c.l.b16 %v389
        %v422 = vpack.c.b16 %v407, %v406
        %v423 = vpack.c.b16 %v409, %v408
        %v424 = vpack.c.b16 %v411, %v410
        %v425 = vpack.c.b16 %v413, %v412
        %v426 = vpack.c.b16 %v415, %v414
        %v427 = vpack.c.b16 %v417, %v416
        %v428 = vpack.c.b16 %v419, %v418
        %v429 = vpack.c.b16 %v421, %v420
        %438 = vmatprep.subr.bf16.mxu0 0
        %439 = vmatpush1.bf16.msra.mxu0 %v429
        %440 = vmatprep.subr.bf16.mxu0 0
        %441 = vmatpush1.bf16.msra.mxu0 %v428
        %442 = vmatprep.subr.bf16.mxu0 0
        %443 = vmatpush1.bf16.msra.mxu0 %v427
        %444 = vmatprep.subr.bf16.mxu0 0
        %445 = vmatpush1.bf16.msra.mxu0 %v426
        %446 = vmatprep.subr.bf16.mxu0 0
        %447 = vmatpush1.bf16.msra.mxu0 %v425
        %448 = vmatprep.subr.bf16.mxu0 0
        %449 = vmatpush1.bf16.msra.mxu0 %v424
        %450 = vmatprep.subr.bf16.mxu0 0
        %451 = vmatpush1.bf16.msra.mxu0 %v423
        %452 = vmatprep.subr.bf16.mxu0 0
        %453 = vmatpush1.bf16.msra.mxu0 %v422
        %454 = vmatprep.subr.bf16.mxu0 0
        %455 = vmatpush2.bf16.msra.mxu0 0
        %456 = vmatprep.subr.bf16.mxu0 0
        %457 = vmatpush2.bf16.msra.mxu0 0
        %458 = vmatprep.subr.bf16.mxu0 0
        %459 = vmatpush2.bf16.msra.mxu0 0
        %460 = vmatprep.subr.bf16.mxu0 0
        %461 = vmatpush2.bf16.msra.mxu0 0
        %462 = vmatprep.subr.bf16.mxu0 0
        %463 = vmatpush2.bf16.msra.mxu0 0
        %464 = vmatprep.subr.bf16.mxu0 0
        %465 = vmatpush2.bf16.msra.mxu0 0
        %466 = vmatprep.subr.bf16.mxu0 0
        %467 = vmatpush2.bf16.msra.mxu0 0
        %468 = vmatprep.subr.bf16.mxu0 0
        %469 = vmatpush2.bf16.msra.mxu0 0
        %470 = vmatprep.mubr.bf16.mxu0 0
        %471 = vmatmul.mubr.bf16.gmra.mxu0 %v334
        %v472 = vpop.f32.mrf.mxu0
        %v473 = vadd.f32 0.0, %v472
        %v474 = vpop.f32.mrf.mxu0
        %v475 = vpop.f32.mrf.mxu0
        %v476 = vadd.f32 0.0, %v475
        %v477 = vpop.f32.mrf.mxu0
        %478 = vmatprep.mubr.bf16.mxu0 0
        %479 = vmatmul.mubr.bf16.gmra.mxu0 %v335
        %v480 = vpop.f32.mrf.mxu0
        %v481 = vadd.f32 0.0, %v480
        %v482 = vpop.f32.mrf.mxu0
        %v483 = vpop.f32.mrf.mxu0
        %v484 = vadd.f32 0.0, %v483
        %v485 = vpop.f32.mrf.mxu0
        %486 = vmatprep.mubr.bf16.mxu0 0
        %487 = vmatmul.mubr.bf16.gmra.mxu0 %v336
        %v488 = vpop.f32.mrf.mxu0
        %v489 = vadd.f32 0.0, %v488
        %v490 = vpop.f32.mrf.mxu0
        %v491 = vpop.f32.mrf.mxu0
        %v492 = vadd.f32 0.0, %v491
        %v493 = vpop.f32.mrf.mxu0
        %494 = vmatprep.mubr.bf16.mxu0 0
        %495 = vmatmul.mubr.bf16.gmra.mxu0 %v337
        %v496 = vpop.f32.mrf.mxu0
        %v497 = vadd.f32 0.0, %v496
        %v498 = vpop.f32.mrf.mxu0
        %v499 = vpop.f32.mrf.mxu0
        %v500 = vadd.f32 0.0, %v499
        %v501 = vpop.f32.mrf.mxu0
        %502 = vdwg.mxu0
        %503 = vst [vmem:[%s202] sm:$0xff] %v473
        %504 = vst [vmem:[%s202 + $0x8] sm:$0xff] %v476
        %505 = vst [vmem:[%s202 + $0x10] sm:$0xff] %v481
        %506 = vst [vmem:[%s202 + $0x18] sm:$0xff] %v484
        %507 = vst [vmem:[%s202 + $0x20] sm:$0xff] %v489
        %508 = vst [vmem:[%s202 + $0x28] sm:$0xff] %v492
        %509 = vst [vmem:[%s202 + $0x30] sm:$0xff] %v497
        %510 = vst [vmem:[%s202 + $0x38] sm:$0xff] %v500
        %s511 = sand.u32 %s98, 1
        %s512 = scalar_lea.sflag [#allocation3], %s511
        %s513 = sand.u32 %s98, 1
        %s514 = smul.addr %s513, 32
        %s515 = scalar_lea.vmem [#allocation2], %s514
        %s516 = sand.u32 %s124, 1
        %s517 = scalar_lea.sflag [#allocation5], %s516
        %s518 = sand.u32 %s124, 1
        %s519 = smul.addr %s518, 64
        %s520 = scalar_lea.vmem [#allocation4], %s519
        // Predicated region
        $region33: #{tpu_custom_call.1} parent=31 // pred_check
          %p521 = pneg %p108
        $region34: #{tpu_custom_call.1} parent=31 // pred_check_branch
          %523 = sbr.rel (%p521) target = $region36
        $region35: #{tpu_custom_call.1} parent=31 // pred_region
          %s524 = smul.u32 8, %s22
          %s526 = ssub.s32 512, 512
          %527 = vsyncadd %s512, %s526
          %s528 = smul.addr %s524, 64
          %s529 = scalar_lea.hbm %s3, %s528
          %s530 = sshll.u32 %s515, 4
          %s531 = int_to_ptr.vmem [resolvable:$true] %s530
          %536 = dma.vmem_to_hbm [thread:$0]  %s531, 512, %s529, %s512, 64, 64, 4
        $region36: #{tpu_custom_call.1} parent=31 // pred_fallthru
          _
        // Predicated region
        $region37: #{tpu_custom_call.1} parent=31 // pred_check
          %p537 = pneg %p134
        $region38: #{tpu_custom_call.1} parent=31 // pred_check_branch
          %539 = sbr.rel (%p537) target = $region40
        $region39: #{tpu_custom_call.1} parent=31 // pred_region
          %s540 = smul.u32 8, %s22
          %s542 = ssub.s32 1024, 1024
          %543 = vsyncadd %s517, %s542
          %s544 = smul.addr %s540, 128
          %s545 = scalar_lea.hbm %s4, %s544
          %s546 = sshll.u32 %s520, 4
          %s547 = int_to_ptr.vmem [resolvable:$true] %s546
          %552 = dma.vmem_to_hbm [thread:$0]  %s547, 1024, %s545, %s517, 128, 128, 8
        $region40: #{tpu_custom_call.1} parent=31 // pred_fallthru
          _
      $region32: #{tpu_custom_call.1} parent=5 // pred_fallthru
        _
      %p553 = scmp.le.s32.totalorder 2, %s17
      // Predicated region
      $region41: #{tpu_custom_call.1} parent=5 // pred_check
        %p554 = pneg %p553
      $region42: #{tpu_custom_call.1} parent=5 // pred_check_branch
        %556 = sbr.rel (%p554) target = $region44
      $region43: #{tpu_custom_call.1} parent=5 // pred_region
        %s557 = ssub.s32 %s17, 2
        // Predicated region
        $region45: #{tpu_custom_call.1} parent=43 // pred_check
          %p558 = pneg %p114
        $region46: #{tpu_custom_call.1} parent=43 // pred_check_branch
          %560 = sbr.rel (%p558) target = $region48
        $region47: #{tpu_custom_call.1} parent=43 // pred_region
          %s561 = sand.u32 %s99, 1
          %s562 = scalar_lea.sflag [#allocation3], %s561
          %s563 = sand.u32 %s99, 1
          %s564 = smul.addr %s563, 32
          %s565 = scalar_lea.vmem [#allocation2], %s564
          %566 = dma.done %s562, 512
        $region48: #{tpu_custom_call.1} parent=43 // pred_fallthru
          _
        // Predicated region
        $region49: #{tpu_custom_call.1} parent=43 // pred_check
          %p567 = pneg %p140
        $region50: #{tpu_custom_call.1} parent=43 // pred_check_branch
          %569 = sbr.rel (%p567) target = $region52
        $region51: #{tpu_custom_call.1} parent=43 // pred_region
          %s570 = sand.u32 %s125, 1
          %s571 = scalar_lea.sflag [#allocation5], %s570
          %s572 = sand.u32 %s125, 1
          %s573 = smul.addr %s572, 64
          %s574 = scalar_lea.vmem [#allocation4], %s573
          %575 = dma.done %s571, 1024
        $region52: #{tpu_custom_call.1} parent=43 // pred_fallthru
          _
      $region44: #{tpu_custom_call.1} parent=5 // pred_fallthru
        _
    $region6: #{tpu_custom_call.1} parent=1 // loop_footer
      %s21 = sadd.s32 1, %s17
    $region7: #{tpu_custom_call.1} parent=1 // loop_footer_branch
      %16 = sbr.rel target = $region3
    $region8: #{tpu_custom_call.1} parent=1 // loop_exit
      _
    %576 = vsyncpa [#allocation3], 1
    %s577 = scalar_lea.sflag [#allocation3], 1
    %578 = vsyncpa %s577, 1
    %579 = vsyncpa [#allocation5], 1
    %s580 = scalar_lea.sflag [#allocation5], 1
    %581 = vsyncpa %s580, 1

</llo_original>
